<compile_context>
chip_gen: v7x
topology: tpu7x:2x2x1
jax: 0.10.0
libtpu: 0.0.40
codegen_flags: <defaults>
</compile_context>

<pallas_src>
import functools

import jax
import jax.numpy as jnp
from jax import lax
from jax.experimental import pallas as pl
from jax.experimental.pallas import tpu as pltpu


_DOT_T = (((1,), (1,)), ((), ()))  # contract axis 1 of both operands: A @ B.T


def _row_normalize(x, eps):
    # 1 / max(||x||, eps) == rsqrt(max(||x||^2, eps^2)); rsqrt lands on the EUP.
    ss = jnp.sum(x * x, axis=1, keepdims=True)
    return x * lax.rsqrt(jnp.maximum(ss, eps * eps))


def _discriminator_kernel(u_row_ref, v_row_ref, u_col_ref, v_col_ref,
                          loss_ref, acc_ref, *, inv_t, eps):
    j = pl.program_id(1)

    u_row = u_row_ref[...].astype(jnp.float32)
    u_col = u_col_ref[...].astype(jnp.float32)
    v_col = v_col_ref[...].astype(jnp.float32)

    un_r = _row_normalize(u_row, eps)
    un_c = _row_normalize(u_col, eps)
    vn_c = _row_normalize(v_col, eps)

    # bf16 operands for the MXU (f32 accumulation); |cos| <= 1 so this is benign.
    un_r_b = un_r.astype(jnp.bfloat16)
    un_c_b = un_c.astype(jnp.bfloat16)
    vn_c_b = vn_c.astype(jnp.bfloat16)

    inter = jnp.exp(inv_t * lax.dot_general(
        un_r_b, vn_c_b, _DOT_T, preferred_element_type=jnp.float32))
    intra = jnp.exp(inv_t * lax.dot_general(
        un_r_b, un_c_b, _DOT_T, preferred_element_type=jnp.float32))

    tile_sum = jnp.sum(inter + intra, axis=1, keepdims=True)  # (TM, 1)

    @pl.when(j == 0)
    def _():
        acc_ref[...] = jnp.zeros_like(acc_ref)

    acc_ref[...] += tile_sum

    @pl.when(j == pl.num_programs(1) - 1)
    def _():
        # Diagonal terms from row-wise dots (computed in f32, no masks needed).
        v_row = v_row_ref[...].astype(jnp.float32)
        vn_r = _row_normalize(v_row, eps)
        pos_logit = inv_t * jnp.sum(un_r * vn_r, axis=1, keepdims=True)
        intra_diag = jnp.exp(inv_t * jnp.sum(un_r * un_r, axis=1, keepdims=True))
        denom = acc_ref[...] - intra_diag
        loss_ref[...] = pos_logit - jnp.log(denom)


def _pick_tile(n):
    for c in (512, 256, 128):
        if n % c == 0:
            return c
    return n


def discriminator_loss(u, v, temper, *, tm=None, tn=None):
    """u, v: (N, D) float arrays. Returns the GRACE per-node loss, shape (N,)."""
    n, d = u.shape
    assert v.shape == (n, d)
    tm = _pick_tile(n) if tm is None else tm
    tn = _pick_tile(n) if tn is None else tn
    assert n % tm == 0 and n % tn == 0

    kernel = functools.partial(
        _discriminator_kernel, inv_t=float(1.0 / temper), eps=1e-8)

    out = pl.pallas_call(
        kernel,
        out_shape=jax.ShapeDtypeStruct((n, 1), jnp.float32),
        grid_spec=pltpu.PrefetchScalarGridSpec(
            num_scalar_prefetch=0,
            grid=(n // tm, n // tn),
            in_specs=[
                pl.BlockSpec((tm, d), lambda i, j: (i, 0)),  # u row tile
                pl.BlockSpec((tm, d), lambda i, j: (i, 0)),  # v row tile
                pl.BlockSpec((tn, d), lambda i, j: (j, 0)),  # u col tile
                pl.BlockSpec((tn, d), lambda i, j: (j, 0)),  # v col tile
            ],
            out_specs=pl.BlockSpec((tm, 1), lambda i, j: (i, 0)),
            scratch_shapes=[pltpu.VMEM((tm, 1), jnp.float32)],
        ),
        compiler_params=pltpu.CompilerParams(
            dimension_semantics=("parallel", "arbitrary")),
    )(u, v, u, v)
    return out[:, 0]


def discriminator_loss_ref(u, v, temper):
    """Pure-JAX reference mirroring the PyTorch Discriminator (f32)."""
    eps = 1e-8
    un = u / jnp.maximum(jnp.linalg.norm(u, axis=1, keepdims=True), eps)
    vn = v / jnp.maximum(jnp.linalg.norm(v, axis=1, keepdims=True), eps)
    inter = jnp.exp((un @ vn.T) / temper)
    intra = jnp.exp((un @ un.T) / temper)
    n = u.shape[0]
    pos_mask = jnp.eye(n, dtype=u.dtype)
    neg_mask = 1.0 - pos_mask
    pos = inter * pos_mask
    neg_inter = inter * neg_mask
    neg_intra = intra * neg_mask
    return jnp.log(jnp.diagonal(pos) / (pos + neg_inter + neg_intra).sum(axis=1))


def grace_forward(params, x1, adj1, x2, adj2, temper):
    """Full GRACE forward (eval mode): dense-adjacency GCN + MLP in plain JAX,
    Pallas discriminator kernel for the contrastive loss."""
    def norm_adj(a):
        n = a.shape[0]
        a = a + jnp.eye(n, dtype=a.dtype)
        d = jnp.sum(a, axis=1)
        d_is = lax.rsqrt(jnp.maximum(d, 1e-12))
        return a * d_is[:, None] * d_is[None, :]

    def gcn(x, a):
        a_hat = norm_adj(a)
        h = jax.nn.relu(a_hat @ (x @ params["gc1_w"]) + params["gc1_b"])
        # TODO(synk): F.dropout (training-mode) omitted; eval-mode forward only.
        return a_hat @ (h @ params["gc2_w"]) + params["gc2_b"]

    def mlp(x):
        h = jax.nn.relu(x @ params["w1"] + params["b1"])
        return h @ params["w2"] + params["b2"]

    u = mlp(gcn(x1, adj1))
    v = mlp(gcn(x2, adj2))
    loss1 = discriminator_loss(u, v, temper)
    loss2 = discriminator_loss(v, u, temper)
    return -jnp.mean((loss1 + loss2) / 2.0)


if __name__ == "__main__":
    # Small, tile-friendly synthetic config: nb_nodes=128, hidden=64, temper=0.5.
    N, D_HID, D_IN = 128, 64, 32
    TEMPER = 0.5

    key = jax.random.PRNGKey(0)
    ku, kv = jax.random.split(key)
    u = jax.random.normal(ku, (N, D_HID), dtype=jnp.float32)
    v = jax.random.normal(kv, (N, D_HID), dtype=jnp.float32)

    loss = jax.block_until_ready(discriminator_loss(u, v, TEMPER))
    ref = discriminator_loss_ref(u, v, TEMPER)
    assert loss.shape == (N,)
    max_err = float(jnp.max(jnp.abs(loss - ref)))
    # bf16 MXU operands loosen per-element accuracy to ~1e-2; diag terms stay f32.
    assert max_err < 2e-2, f"max abs err {max_err}"

    # End-to-end GRACE forward (GCN + MLP in JAX, Pallas discriminator inside).
    keys = jax.random.split(jax.random.PRNGKey(0), 8)

    def glorot(k, shape):
        lim = (6.0 / (shape[0] + shape[1])) ** 0.5
        return jax.random.uniform(k, shape, jnp.float32, -lim, lim)

    params = {
        "gc1_w": glorot(keys[0], (D_IN, D_HID)),
        "gc1_b": jnp.zeros((D_HID,), jnp.float32),
        "gc2_w": glorot(keys[1], (D_HID, D_HID)),
        "gc2_b": jnp.zeros((D_HID,), jnp.float32),
        "w1": glorot(keys[2], (D_HID, D_HID)),
        "b1": jnp.zeros((D_HID,), jnp.float32),
        "w2": glorot(keys[3], (D_HID, D_HID)),
        "b2": jnp.zeros((D_HID,), jnp.float32),
    }
    x1 = jax.random.normal(keys[4], (N, D_IN), jnp.float32)
    x2 = jax.random.normal(keys[5], (N, D_IN), jnp.float32)
    adj1 = (jax.random.uniform(keys[6], (N, N)) < 0.05).astype(jnp.float32)
    adj2 = (jax.random.uniform(keys[7], (N, N)) < 0.05).astype(jnp.float32)
    adj1 = jnp.maximum(adj1, adj1.T)
    adj2 = jnp.maximum(adj2, adj2.T)

    total = jax.block_until_ready(
        grace_forward(params, x1, adj1, x2, adj2, TEMPER))
    assert total.shape == ()
    assert bool(jnp.isfinite(total))

    print("KERNEL_OK")
</pallas_src>

<mosaic_0001>
module attributes {stable_mosaic.version = 11 : i64} {
  func.func @_discriminator_kernel(%arg0: i32, %arg1: i32, %arg2: memref<128x64xf32, #tpu.memory_space<vmem>>, %arg3: memref<128x64xf32, #tpu.memory_space<vmem>>, %arg4: memref<128x64xf32, #tpu.memory_space<vmem>>, %arg5: memref<128x64xf32, #tpu.memory_space<vmem>>, %arg6: memref<128x1xf32, #tpu.memory_space<vmem>>, %arg7: memref<128x1xf32, #tpu.memory_space<vmem>>) attributes {dimension_semantics = [#tpu.dimension_semantics<parallel>, #tpu.dimension_semantics<arbitrary>], iteration_bounds = array<i64: 1, 1>, scalar_prefetch = 0 : i64, scratch_operands = 1 : i64, tpu.core_type = #tpu.core_type<tc>, window_params = [{transform_indices = @transform_0, window_bounds = array<i64: 128, 64>}, {transform_indices = @transform_1, window_bounds = array<i64: 128, 64>}, {transform_indices = @transform_2, window_bounds = array<i64: 128, 64>}, {transform_indices = @transform_3, window_bounds = array<i64: 128, 64>}, {transform_indices = @transform_4, window_bounds = array<i64: 128, 1>}]} {
    %c0 = arith.constant 0 : index
    %c0_0 = arith.constant 0 : index
    %0 = vector.load %arg2[%c0, %c0_0] : memref<128x64xf32, #tpu.memory_space<vmem>>, vector<128x64xf32>
    %c0_1 = arith.constant 0 : index
    %c0_2 = arith.constant 0 : index
    %1 = vector.load %arg4[%c0_1, %c0_2] : memref<128x64xf32, #tpu.memory_space<vmem>>, vector<128x64xf32>
    %c0_3 = arith.constant 0 : index
    %c0_4 = arith.constant 0 : index
    %2 = vector.load %arg5[%c0_3, %c0_4] : memref<128x64xf32, #tpu.memory_space<vmem>>, vector<128x64xf32>
    %3 = arith.mulf %0, %0 : vector<128x64xf32>
    %cst = arith.constant dense<0.000000e+00> : vector<128xf32>
    %4 = vector.multi_reduction <add>, %3, %cst [1] : vector<128x64xf32> to vector<128xf32>
    %5 = vector.shape_cast %4 : vector<128xf32> to vector<128x1xf32>
    %cst_5 = arith.constant 1.000000e-16 : f32
    %6 = vector.broadcast %cst_5 : f32 to vector<128x1xf32>
    %7 = arith.maximumf %5, %6 : vector<128x1xf32>
    %8 = math.rsqrt %7 : vector<128x1xf32>
    %9 = vector.broadcast %8 : vector<128x1xf32> to vector<128x64xf32>
    %10 = arith.mulf %0, %9 : vector<128x64xf32>
    %11 = arith.mulf %1, %1 : vector<128x64xf32>
    %cst_6 = arith.constant dense<0.000000e+00> : vector<128xf32>
    %12 = vector.multi_reduction <add>, %11, %cst_6 [1] : vector<128x64xf32> to vector<128xf32>
    %13 = vector.shape_cast %12 : vector<128xf32> to vector<128x1xf32>
    %cst_7 = arith.constant 1.000000e-16 : f32
    %14 = vector.broadcast %cst_7 : f32 to vector<128x1xf32>
    %15 = arith.maximumf %13, %14 : vector<128x1xf32>
    %16 = math.rsqrt %15 : vector<128x1xf32>
    %17 = vector.broadcast %16 : vector<128x1xf32> to vector<128x64xf32>
    %18 = arith.mulf %1, %17 : vector<128x64xf32>
    %19 = arith.mulf %2, %2 : vector<128x64xf32>
    %cst_8 = arith.constant dense<0.000000e+00> : vector<128xf32>
    %20 = vector.multi_reduction <add>, %19, %cst_8 [1] : vector<128x64xf32> to vector<128xf32>
    %21 = vector.shape_cast %20 : vector<128xf32> to vector<128x1xf32>
    %cst_9 = arith.constant 1.000000e-16 : f32
    %22 = vector.broadcast %cst_9 : f32 to vector<128x1xf32>
    %23 = arith.maximumf %21, %22 : vector<128x1xf32>
    %24 = math.rsqrt %23 : vector<128x1xf32>
    %25 = vector.broadcast %24 : vector<128x1xf32> to vector<128x64xf32>
    %26 = arith.mulf %2, %25 : vector<128x64xf32>
    %27 = arith.truncf %10 : vector<128x64xf32> to vector<128x64xbf16>
    %28 = arith.truncf %18 : vector<128x64xf32> to vector<128x64xbf16>
    %29 = arith.truncf %26 : vector<128x64xf32> to vector<128x64xbf16>
    %cst_10 = arith.constant dense<0.000000e+00> : vector<128x128xf32>
    %30 = tpu.matmul %27, %29, %cst_10 {dimension_numbers = #tpu.dot_dimension_numbers<[1], [1], [0], [0], [0, 0, 1, 0], [], []>} : vector<128x64xbf16>, vector<128x64xbf16>, vector<128x128xf32> -> vector<128x128xf32>
    %cst_11 = arith.constant 2.000000e+00 : f32
    %31 = vector.broadcast %cst_11 : f32 to vector<128x128xf32>
    %32 = arith.mulf %31, %30 : vector<128x128xf32>
    %33 = math.exp %32 : vector<128x128xf32>
    %cst_12 = arith.constant dense<0.000000e+00> : vector<128x128xf32>
    %34 = tpu.matmul %27, %28, %cst_12 {dimension_numbers = #tpu.dot_dimension_numbers<[1], [1], [0], [0], [0, 0, 1, 0], [], []>} : vector<128x64xbf16>, vector<128x64xbf16>, vector<128x128xf32> -> vector<128x128xf32>
    %cst_13 = arith.constant 2.000000e+00 : f32
    %35 = vector.broadcast %cst_13 : f32 to vector<128x128xf32>
    %36 = arith.mulf %35, %34 : vector<128x128xf32>
    %37 = math.exp %36 : vector<128x128xf32>
    %38 = arith.addf %33, %37 : vector<128x128xf32>
    %cst_14 = arith.constant dense<0.000000e+00> : vector<128xf32>
    %39 = vector.multi_reduction <add>, %38, %cst_14 [1] : vector<128x128xf32> to vector<128xf32>
    %40 = vector.shape_cast %39 : vector<128xf32> to vector<128x1xf32>
    %c0_i32 = arith.constant 0 : i32
    %41 = arith.cmpi eq, %arg1, %c0_i32 : i32
    %42 = arith.extui %41 : i1 to i32
    %c0_i32_15 = arith.constant 0 : i32
    %43 = arith.cmpi ne, %42, %c0_i32_15 : i32
    scf.if %43 {
      %cst_22 = arith.constant 0.000000e+00 : f32
      %50 = vector.broadcast %cst_22 : f32 to vector<128x1xf32>
      %c0_23 = arith.constant 0 : index
      %c0_24 = arith.constant 0 : index
      %51 = vector.load %arg7[%c0_23, %c0_24] : memref<128x1xf32, #tpu.memory_space<vmem>>, vector<128x1xf32>
      tpu.vector_store %arg7[%c0_23, %c0_24], %50 {strides = array<i32>} : memref<128x1xf32, #tpu.memory_space<vmem>>, vector<128x1xf32>,
    } else {
    }
    %c0_16 = arith.constant 0 : index
    %c0_17 = arith.constant 0 : index
    %44 = vector.load %arg7[%c0_16, %c0_17] : memref<128x1xf32, #tpu.memory_space<vmem>>, vector<128x1xf32>
    %45 = arith.addf %44, %40 : vector<128x1xf32>
    %c0_18 = arith.constant 0 : index
    %c0_19 = arith.constant 0 : index
    %46 = vector.load %arg7[%c0_18, %c0_19] : memref<128x1xf32, #tpu.memory_space<vmem>>, vector<128x1xf32>
    tpu.vector_store %arg7[%c0_18, %c0_19], %45 {strides = array<i32>} : memref<128x1xf32, #tpu.memory_space<vmem>>, vector<128x1xf32>,
    %c0_i32_20 = arith.constant 0 : i32
    %47 = arith.cmpi eq, %arg1, %c0_i32_20 : i32
    %48 = arith.extui %47 : i1 to i32
    %c0_i32_21 = arith.constant 0 : i32
    %49 = arith.cmpi ne, %48, %c0_i32_21 : i32
    scf.if %49 {
      %c0_22 = arith.constant 0 : index
      %c0_23 = arith.constant 0 : index
      %50 = vector.load %arg3[%c0_22, %c0_23] : memref<128x64xf32, #tpu.memory_space<vmem>>, vector<128x64xf32>
      %51 = arith.mulf %50, %50 : vector<128x64xf32>
      %cst_24 = arith.constant dense<0.000000e+00> : vector<128xf32>
      %52 = vector.multi_reduction <add>, %51, %cst_24 [1] : vector<128x64xf32> to vector<128xf32>
      %53 = vector.shape_cast %52 : vector<128xf32> to vector<128x1xf32>
      %cst_25 = arith.constant 1.000000e-16 : f32
      %54 = vector.broadcast %cst_25 : f32 to vector<128x1xf32>
      %55 = arith.maximumf %53, %54 : vector<128x1xf32>
      %56 = math.rsqrt %55 : vector<128x1xf32>
      %57 = vector.broadcast %56 : vector<128x1xf32> to vector<128x64xf32>
      %58 = arith.mulf %50, %57 : vector<128x64xf32>
      %59 = arith.mulf %10, %58 : vector<128x64xf32>
      %cst_26 = arith.constant dense<0.000000e+00> : vector<128xf32>
      %60 = vector.multi_reduction <add>, %59, %cst_26 [1] : vector<128x64xf32> to vector<128xf32>
      %61 = vector.shape_cast %60 : vector<128xf32> to vector<128x1xf32>
      %cst_27 = arith.constant 2.000000e+00 : f32
      %62 = vector.broadcast %cst_27 : f32 to vector<128x1xf32>
      %63 = arith.mulf %62, %61 : vector<128x1xf32>
      %64 = arith.mulf %10, %10 : vector<128x64xf32>
      %cst_28 = arith.constant dense<0.000000e+00> : vector<128xf32>
      %65 = vector.multi_reduction <add>, %64, %cst_28 [1] : vector<128x64xf32> to vector<128xf32>
      %66 = vector.shape_cast %65 : vector<128xf32> to vector<128x1xf32>
      %cst_29 = arith.constant 2.000000e+00 : f32
      %67 = vector.broadcast %cst_29 : f32 to vector<128x1xf32>
      %68 = arith.mulf %67, %66 : vector<128x1xf32>
      %69 = math.exp %68 : vector<128x1xf32>
      %c0_30 = arith.constant 0 : index
      %c0_31 = arith.constant 0 : index
      %70 = vector.load %arg7[%c0_30, %c0_31] : memref<128x1xf32, #tpu.memory_space<vmem>>, vector<128x1xf32>
      %71 = arith.subf %70, %69 : vector<128x1xf32>
      %72 = math.log %71 : vector<128x1xf32>
      %73 = arith.subf %63, %72 : vector<128x1xf32>
      %c0_32 = arith.constant 0 : index
      %c0_33 = arith.constant 0 : index
      %74 = vector.load %arg6[%c0_32, %c0_33] : memref<128x1xf32, #tpu.memory_space<vmem>>, vector<128x1xf32>
      tpu.vector_store %arg6[%c0_32, %c0_33], %73 {strides = array<i32>} : memref<128x1xf32, #tpu.memory_space<vmem>>, vector<128x1xf32>,
    } else {
    }
    return
  }
  func.func @transform_0(%arg0: i32, %arg1: i32) -> (i32, i32) {
    %c0_i32 = arith.constant 0 : i32
    %c0_i32_0 = arith.constant 0 : i32
    return %arg0, %c0_i32 : i32, i32
  }
  func.func @transform_1(%arg0: i32, %arg1: i32) -> (i32, i32) {
    %c0_i32 = arith.constant 0 : i32
    %c0_i32_0 = arith.constant 0 : i32
    return %arg0, %c0_i32 : i32, i32
  }
  func.func @transform_2(%arg0: i32, %arg1: i32) -> (i32, i32) {
    %c0_i32 = arith.constant 0 : i32
    %c0_i32_0 = arith.constant 0 : i32
    return %arg1, %c0_i32 : i32, i32
  }
  func.func @transform_3(%arg0: i32, %arg1: i32) -> (i32, i32) {
    %c0_i32 = arith.constant 0 : i32
    %c0_i32_0 = arith.constant 0 : i32
    return %arg1, %c0_i32 : i32, i32
  }
  func.func @transform_4(%arg0: i32, %arg1: i32) -> (i32, i32) {
    %c0_i32 = arith.constant 0 : i32
    %c0_i32_0 = arith.constant 0 : i32
    return %arg0, %c0_i32 : i32, i32
  }
}

</mosaic_0001>

<llo_original>
// kernel: tpu_custom_call.1
$region0: #{tpu_custom_call.1}
  #allocation0 [shape = 'u32[]', space=smem, size = 0x4, offset = 0x4, fixed_abs, tag = 'smem constant byte address 0x4 - core index']
  #allocation1 [shape = 'u32[144,128]{1,0:T(1,128)}', space=vmem, size = 0x12000, scoped, tag = 'internal scratch']
  #allocation2 [shape = 'f32[128,1]{1,0:T(8,128)}', space=vmem, size = 0x10000, scoped, tag = 'scratch operand']
  %s0 = inlined_call_operand.vmem [shape: f32[128,64], index: 0, kind: input, shape index: {}]
  %s1 = inlined_call_operand.vmem [shape: f32[128,64], index: 1, kind: input, shape index: {}]
  %s2 = inlined_call_operand.vmem [shape: f32[128,64], index: 2, kind: input, shape index: {}]
  %s3 = inlined_call_operand.vmem [shape: f32[128,64], index: 3, kind: input, shape index: {}]
  %s4 = inlined_call_operand.vmem [shape: f32[128,1], index: 4, kind: output, shape index: {}]
  %s5 = sld [smem:[#allocation0]]
  $region34: #{tpu_custom_call.1} parent=0
    _
  %s7 = ssub.s32 1, %s5
  %s8 = scalar_select 0, %s7, %s5
  // Predicated region
  $region2: #{tpu_custom_call.1} parent=0 // pred_check
    _
  $region3: #{tpu_custom_call.1} parent=0 // pred_check_branch
    %10 = sbr.rel (0) target = $region5
  $region4: #{tpu_custom_call.1} parent=0 // pred_region
    _
  $region5: #{tpu_custom_call.1} parent=0 // pred_fallthru
    _
  // Predicated region
  $region6: #{tpu_custom_call.1} parent=0 // pred_check
    _
  $region7: #{tpu_custom_call.1} parent=0 // pred_check_branch
    %12 = sbr.rel (0) target = $region9
  $region8: #{tpu_custom_call.1} parent=0 // pred_region
    _
  $region9: #{tpu_custom_call.1} parent=0 // pred_fallthru
    _
  // Predicated region
  $region10: #{tpu_custom_call.1} parent=0 // pred_check
    _
  $region11: #{tpu_custom_call.1} parent=0 // pred_check_branch
    %14 = sbr.rel (0) target = $region13
  $region12: #{tpu_custom_call.1} parent=0 // pred_region
    _
  $region13: #{tpu_custom_call.1} parent=0 // pred_fallthru
    _
  // Predicated region
  $region14: #{tpu_custom_call.1} parent=0 // pred_check
    _
  $region15: #{tpu_custom_call.1} parent=0 // pred_check_branch
    %16 = sbr.rel (0) target = $region17
  $region16: #{tpu_custom_call.1} parent=0 // pred_region
    _
  $region17: #{tpu_custom_call.1} parent=0 // pred_fallthru
    _
  %v18 = vld [vmem:[%s0] sm:$0xff]
  %v19 = vld [vmem:[%s0 + $0x8] sm:$0xff]
  %v20 = vld [vmem:[%s0 + $0x10] sm:$0xff]
  %v21 = vld [vmem:[%s0 + $0x18] sm:$0xff]
  %v22 = vld [vmem:[%s0 + $0x20] sm:$0xff]
  %v23 = vld [vmem:[%s0 + $0x28] sm:$0xff]
  %v24 = vld [vmem:[%s0 + $0x30] sm:$0xff]
  %v25 = vld [vmem:[%s0 + $0x38] sm:$0xff]
  %v26 = vld [vmem:[%s0 + $0x40] sm:$0xff]
  %v27 = vld [vmem:[%s0 + $0x48] sm:$0xff]
  %v28 = vld [vmem:[%s0 + $0x50] sm:$0xff]
  %v29 = vld [vmem:[%s0 + $0x58] sm:$0xff]
  %v30 = vld [vmem:[%s0 + $0x60] sm:$0xff]
  %v31 = vld [vmem:[%s0 + $0x68] sm:$0xff]
  %v32 = vld [vmem:[%s0 + $0x70] sm:$0xff]
  %v33 = vld [vmem:[%s0 + $0x78] sm:$0xff]
  %v34 = vld [vmem:[%s2] sm:$0xff]
  %v35 = vld [vmem:[%s2 + $0x8] sm:$0xff]
  %v36 = vld [vmem:[%s2 + $0x10] sm:$0xff]
  %v37 = vld [vmem:[%s2 + $0x18] sm:$0xff]
  %v38 = vld [vmem:[%s2 + $0x20] sm:$0xff]
  %v39 = vld [vmem:[%s2 + $0x28] sm:$0xff]
  %v40 = vld [vmem:[%s2 + $0x30] sm:$0xff]
  %v41 = vld [vmem:[%s2 + $0x38] sm:$0xff]
  %v42 = vld [vmem:[%s2 + $0x40] sm:$0xff]
  %v43 = vld [vmem:[%s2 + $0x48] sm:$0xff]
  %v44 = vld [vmem:[%s2 + $0x50] sm:$0xff]
  %v45 = vld [vmem:[%s2 + $0x58] sm:$0xff]
  %v46 = vld [vmem:[%s2 + $0x60] sm:$0xff]
  %v47 = vld [vmem:[%s2 + $0x68] sm:$0xff]
  %v48 = vld [vmem:[%s2 + $0x70] sm:$0xff]
  %v49 = vld [vmem:[%s2 + $0x78] sm:$0xff]
  %v50 = vld [vmem:[%s3] sm:$0xff]
  %v51 = vld [vmem:[%s3 + $0x8] sm:$0xff]
  %v52 = vld [vmem:[%s3 + $0x10] sm:$0xff]
  %v53 = vld [vmem:[%s3 + $0x18] sm:$0xff]
  %v54 = vld [vmem:[%s3 + $0x20] sm:$0xff]
  %v55 = vld [vmem:[%s3 + $0x28] sm:$0xff]
  %v56 = vld [vmem:[%s3 + $0x30] sm:$0xff]
  %v57 = vld [vmem:[%s3 + $0x38] sm:$0xff]
  %v58 = vld [vmem:[%s3 + $0x40] sm:$0xff]
  %v59 = vld [vmem:[%s3 + $0x48] sm:$0xff]
  %v60 = vld [vmem:[%s3 + $0x50] sm:$0xff]
  %v61 = vld [vmem:[%s3 + $0x58] sm:$0xff]
  %v62 = vld [vmem:[%s3 + $0x60] sm:$0xff]
  %v63 = vld [vmem:[%s3 + $0x68] sm:$0xff]
  %v64 = vld [vmem:[%s3 + $0x70] sm:$0xff]
  %v65 = vld [vmem:[%s3 + $0x78] sm:$0xff]
  %v66 = vmul.f32 %v18, %v18
  %v67 = vmul.f32 %v19, %v19
  %v68 = vmul.f32 %v20, %v20
  %v69 = vmul.f32 %v21, %v21
  %v70 = vmul.f32 %v22, %v22
  %v71 = vmul.f32 %v23, %v23
  %v72 = vmul.f32 %v24, %v24
  %v73 = vmul.f32 %v25, %v25
  %v74 = vmul.f32 %v26, %v26
  %v75 = vmul.f32 %v27, %v27
  %v76 = vmul.f32 %v28, %v28
  %v77 = vmul.f32 %v29, %v29
  %v78 = vmul.f32 %v30, %v30
  %v79 = vmul.f32 %v31, %v31
  %v80 = vmul.f32 %v32, %v32
  %v81 = vmul.f32 %v33, %v33
  %vm82 = vcmask 523264
  %v83 = vsel %vm82, %v66, 0.0
  %84 = vadd.xlane.f32.xlu0 %v83
  %v85 = vpop.xlane.xlu0 %84
  %v86 = vsel %vm82, %v67, 0.0
  %87 = vadd.xlane.f32.xlu0 %v86
  %v88 = vpop.xlane.xlu0 %87
  %v89 = vsel %vm82, %v68, 0.0
  %90 = vadd.xlane.f32.xlu0 %v89
  %v91 = vpop.xlane.xlu0 %90
  %v92 = vsel %vm82, %v69, 0.0
  %93 = vadd.xlane.f32.xlu0 %v92
  %v94 = vpop.xlane.xlu0 %93
  %v95 = vsel %vm82, %v70, 0.0
  %96 = vadd.xlane.f32.xlu0 %v95
  %v97 = vpop.xlane.xlu0 %96
  %v98 = vsel %vm82, %v71, 0.0
  %99 = vadd.xlane.f32.xlu0 %v98
  %v100 = vpop.xlane.xlu0 %99
  %v101 = vsel %vm82, %v72, 0.0
  %102 = vadd.xlane.f32.xlu0 %v101
  %v103 = vpop.xlane.xlu0 %102
  %v104 = vsel %vm82, %v73, 0.0
  %105 = vadd.xlane.f32.xlu0 %v104
  %v106 = vpop.xlane.xlu0 %105
  %v107 = vsel %vm82, %v74, 0.0
  %108 = vadd.xlane.f32.xlu0 %v107
  %v109 = vpop.xlane.xlu0 %108
  %v110 = vsel %vm82, %v75, 0.0
  %111 = vadd.xlane.f32.xlu0 %v110
  %v112 = vpop.xlane.xlu0 %111
  %v113 = vsel %vm82, %v76, 0.0
  %114 = vadd.xlane.f32.xlu0 %v113
  %v115 = vpop.xlane.xlu0 %114
  %v116 = vsel %vm82, %v77, 0.0
  %117 = vadd.xlane.f32.xlu0 %v116
  %v118 = vpop.xlane.xlu0 %117
  %v119 = vsel %vm82, %v78, 0.0
  %120 = vadd.xlane.f32.xlu0 %v119
  %v121 = vpop.xlane.xlu0 %120
  %v122 = vsel %vm82, %v79, 0.0
  %123 = vadd.xlane.f32.xlu0 %v122
  %v124 = vpop.xlane.xlu0 %123
  %v125 = vsel %vm82, %v80, 0.0
  %126 = vadd.xlane.f32.xlu0 %v125
  %v127 = vpop.xlane.xlu0 %126
  %v128 = vsel %vm82, %v81, 0.0
  %129 = vadd.xlane.f32.xlu0 %v128
  %v130 = vpop.xlane.xlu0 %129
  %v131 = vmax.f32 %v85, 1e-16
  %v132 = vmax.f32 %v88, 1e-16
  %v133 = vmax.f32 %v91, 1e-16
  %v134 = vmax.f32 %v94, 1e-16
  %v135 = vmax.f32 %v97, 1e-16
  %v136 = vmax.f32 %v100, 1e-16
  %v137 = vmax.f32 %v103, 1e-16
  %v138 = vmax.f32 %v106, 1e-16
  %v139 = vmax.f32 %v109, 1e-16
  %v140 = vmax.f32 %v112, 1e-16
  %v141 = vmax.f32 %v115, 1e-16
  %v142 = vmax.f32 %v118, 1e-16
  %v143 = vmax.f32 %v121, 1e-16
  %v144 = vmax.f32 %v124, 1e-16
  %v145 = vmax.f32 %v127, 1e-16
  %v146 = vmax.f32 %v130, 1e-16
  %v147 = vrsqrt.pop %v131
  %v148 = vrsqrt.pop %v132
  %v149 = vrsqrt.pop %v133
  %v150 = vrsqrt.pop %v134
  %v151 = vrsqrt.pop %v135
  %v152 = vrsqrt.pop %v136
  %v153 = vrsqrt.pop %v137
  %v154 = vrsqrt.pop %v138
  %v155 = vrsqrt.pop %v139
  %v156 = vrsqrt.pop %v140
  %v157 = vrsqrt.pop %v141
  %v158 = vrsqrt.pop %v142
  %v159 = vrsqrt.pop %v143
  %v160 = vrsqrt.pop %v144
  %v161 = vrsqrt.pop %v145
  %v162 = vrsqrt.pop %v146
  %v163 = vmul.f32 %v18, %v147
  %v164 = vmul.f32 %v19, %v148
  %v165 = vmul.f32 %v20, %v149
  %v166 = vmul.f32 %v21, %v150
  %v167 = vmul.f32 %v22, %v151
  %v168 = vmul.f32 %v23, %v152
  %v169 = vmul.f32 %v24, %v153
  %v170 = vmul.f32 %v25, %v154
  %v171 = vmul.f32 %v26, %v155
  %v172 = vmul.f32 %v27, %v156
  %v173 = vmul.f32 %v28, %v157
  %v174 = vmul.f32 %v29, %v158
  %v175 = vmul.f32 %v30, %v159
  %v176 = vmul.f32 %v31, %v160
  %v177 = vmul.f32 %v32, %v161
  %v178 = vmul.f32 %v33, %v162
  %v179 = vmul.f32 %v34, %v34
  %v180 = vmul.f32 %v35, %v35
  %v181 = vmul.f32 %v36, %v36
  %v182 = vmul.f32 %v37, %v37
  %v183 = vmul.f32 %v38, %v38
  %v184 = vmul.f32 %v39, %v39
  %v185 = vmul.f32 %v40, %v40
  %v186 = vmul.f32 %v41, %v41
  %v187 = vmul.f32 %v42, %v42
  %v188 = vmul.f32 %v43, %v43
  %v189 = vmul.f32 %v44, %v44
  %v190 = vmul.f32 %v45, %v45
  %v191 = vmul.f32 %v46, %v46
  %v192 = vmul.f32 %v47, %v47
  %v193 = vmul.f32 %v48, %v48
  %v194 = vmul.f32 %v49, %v49
  %v195 = vsel %vm82, %v179, 0.0
  %196 = vadd.xlane.f32.xlu0 %v195
  %v197 = vpop.xlane.xlu0 %196
  %v198 = vsel %vm82, %v180, 0.0
  %199 = vadd.xlane.f32.xlu0 %v198
  %v200 = vpop.xlane.xlu0 %199
  %v201 = vsel %vm82, %v181, 0.0
  %202 = vadd.xlane.f32.xlu0 %v201
  %v203 = vpop.xlane.xlu0 %202
  %v204 = vsel %vm82, %v182, 0.0
  %205 = vadd.xlane.f32.xlu0 %v204
  %v206 = vpop.xlane.xlu0 %205
  %v207 = vsel %vm82, %v183, 0.0
  %208 = vadd.xlane.f32.xlu0 %v207
  %v209 = vpop.xlane.xlu0 %208
  %v210 = vsel %vm82, %v184, 0.0
  %211 = vadd.xlane.f32.xlu0 %v210
  %v212 = vpop.xlane.xlu0 %211
  %v213 = vsel %vm82, %v185, 0.0
  %214 = vadd.xlane.f32.xlu0 %v213
  %v215 = vpop.xlane.xlu0 %214
  %v216 = vsel %vm82, %v186, 0.0
  %217 = vadd.xlane.f32.xlu0 %v216
  %v218 = vpop.xlane.xlu0 %217
  %v219 = vsel %vm82, %v187, 0.0
  %220 = vadd.xlane.f32.xlu0 %v219
  %v221 = vpop.xlane.xlu0 %220
  %v222 = vsel %vm82, %v188, 0.0
  %223 = vadd.xlane.f32.xlu0 %v222
  %v224 = vpop.xlane.xlu0 %223
  %v225 = vsel %vm82, %v189, 0.0
  %226 = vadd.xlane.f32.xlu0 %v225
  %v227 = vpop.xlane.xlu0 %226
  %v228 = vsel %vm82, %v190, 0.0
  %229 = vadd.xlane.f32.xlu0 %v228
  %v230 = vpop.xlane.xlu0 %229
  %v231 = vsel %vm82, %v191, 0.0
  %232 = vadd.xlane.f32.xlu0 %v231
  %v233 = vpop.xlane.xlu0 %232
  %v234 = vsel %vm82, %v192, 0.0
  %235 = vadd.xlane.f32.xlu0 %v234
  %v236 = vpop.xlane.xlu0 %235
  %v237 = vsel %vm82, %v193, 0.0
  %238 = vadd.xlane.f32.xlu0 %v237
  %v239 = vpop.xlane.xlu0 %238
  %v240 = vsel %vm82, %v194, 0.0
  %241 = vadd.xlane.f32.xlu0 %v240
  %v242 = vpop.xlane.xlu0 %241
  %v243 = vmax.f32 %v197, 1e-16
  %v244 = vmax.f32 %v200, 1e-16
  %v245 = vmax.f32 %v203, 1e-16
  %v246 = vmax.f32 %v206, 1e-16
  %v247 = vmax.f32 %v209, 1e-16
  %v248 = vmax.f32 %v212, 1e-16
  %v249 = vmax.f32 %v215, 1e-16
  %v250 = vmax.f32 %v218, 1e-16
  %v251 = vmax.f32 %v221, 1e-16
  %v252 = vmax.f32 %v224, 1e-16
  %v253 = vmax.f32 %v227, 1e-16
  %v254 = vmax.f32 %v230, 1e-16
  %v255 = vmax.f32 %v233, 1e-16
  %v256 = vmax.f32 %v236, 1e-16
  %v257 = vmax.f32 %v239, 1e-16
  %v258 = vmax.f32 %v242, 1e-16
  %v259 = vrsqrt.pop %v243
  %v260 = vrsqrt.pop %v244
  %v261 = vrsqrt.pop %v245
  %v262 = vrsqrt.pop %v246
  %v263 = vrsqrt.pop %v247
  %v264 = vrsqrt.pop %v248
  %v265 = vrsqrt.pop %v249
  %v266 = vrsqrt.pop %v250
  %v267 = vrsqrt.pop %v251
  %v268 = vrsqrt.pop %v252
  %v269 = vrsqrt.pop %v253
  %v270 = vrsqrt.pop %v254
  %v271 = vrsqrt.pop %v255
  %v272 = vrsqrt.pop %v256
  %v273 = vrsqrt.pop %v257
  %v274 = vrsqrt.pop %v258
  %v275 = vmul.f32 %v34, %v259
  %v276 = vmul.f32 %v35, %v260
  %v277 = vmul.f32 %v36, %v261
  %v278 = vmul.f32 %v37, %v262
  %v279 = vmul.f32 %v38, %v263
  %v280 = vmul.f32 %v39, %v264
  %v281 = vmul.f32 %v40, %v265
  %v282 = vmul.f32 %v41, %v266
  %v283 = vmul.f32 %v42, %v267
  %v284 = vmul.f32 %v43, %v268
  %v285 = vmul.f32 %v44, %v269
  %v286 = vmul.f32 %v45, %v270
  %v287 = vmul.f32 %v46, %v271
  %v288 = vmul.f32 %v47, %v272
  %v289 = vmul.f32 %v48, %v273
  %v290 = vmul.f32 %v49, %v274
  %v291 = vmul.f32 %v50, %v50
  %v292 = vmul.f32 %v51, %v51
  %v293 = vmul.f32 %v52, %v52
  %v294 = vmul.f32 %v53, %v53
  %v295 = vmul.f32 %v54, %v54
  %v296 = vmul.f32 %v55, %v55
  %v297 = vmul.f32 %v56, %v56
  %v298 = vmul.f32 %v57, %v57
  %v299 = vmul.f32 %v58, %v58
  %v300 = vmul.f32 %v59, %v59
  %v301 = vmul.f32 %v60, %v60
  %v302 = vmul.f32 %v61, %v61
  %v303 = vmul.f32 %v62, %v62
  %v304 = vmul.f32 %v63, %v63
  %v305 = vmul.f32 %v64, %v64
  %v306 = vmul.f32 %v65, %v65
  %v307 = vsel %vm82, %v291, 0.0
  %308 = vadd.xlane.f32.xlu0 %v307
  %v309 = vpop.xlane.xlu0 %308
  %v310 = vsel %vm82, %v292, 0.0
  %311 = vadd.xlane.f32.xlu0 %v310
  %v312 = vpop.xlane.xlu0 %311
  %v313 = vsel %vm82, %v293, 0.0
  %314 = vadd.xlane.f32.xlu0 %v313
  %v315 = vpop.xlane.xlu0 %314
  %v316 = vsel %vm82, %v294, 0.0
  %317 = vadd.xlane.f32.xlu0 %v316
  %v318 = vpop.xlane.xlu0 %317
  %v319 = vsel %vm82, %v295, 0.0
  %320 = vadd.xlane.f32.xlu0 %v319
  %v321 = vpop.xlane.xlu0 %320
  %v322 = vsel %vm82, %v296, 0.0
  %323 = vadd.xlane.f32.xlu0 %v322
  %v324 = vpop.xlane.xlu0 %323
  %v325 = vsel %vm82, %v297, 0.0
  %326 = vadd.xlane.f32.xlu0 %v325
  %v327 = vpop.xlane.xlu0 %326
  %v328 = vsel %vm82, %v298, 0.0
  %329 = vadd.xlane.f32.xlu0 %v328
  %v330 = vpop.xlane.xlu0 %329
  %v331 = vsel %vm82, %v299, 0.0
  %332 = vadd.xlane.f32.xlu0 %v331
  %v333 = vpop.xlane.xlu0 %332
  %v334 = vsel %vm82, %v300, 0.0
  %335 = vadd.xlane.f32.xlu0 %v334
  %v336 = vpop.xlane.xlu0 %335
  %v337 = vsel %vm82, %v301, 0.0
  %338 = vadd.xlane.f32.xlu0 %v337
  %v339 = vpop.xlane.xlu0 %338
  %v340 = vsel %vm82, %v302, 0.0
  %341 = vadd.xlane.f32.xlu0 %v340
  %v342 = vpop.xlane.xlu0 %341
  %v343 = vsel %vm82, %v303, 0.0
  %344 = vadd.xlane.f32.xlu0 %v343
  %v345 = vpop.xlane.xlu0 %344
  %v346 = vsel %vm82, %v304, 0.0
  %347 = vadd.xlane.f32.xlu0 %v346
  %v348 = vpop.xlane.xlu0 %347
  %v349 = vsel %vm82, %v305, 0.0
  %350 = vadd.xlane.f32.xlu0 %v349
  %v351 = vpop.xlane.xlu0 %350
  %v352 = vsel %vm82, %v306, 0.0
  %353 = vadd.xlane.f32.xlu0 %v352
  %v354 = vpop.xlane.xlu0 %353
  %v355 = vmax.f32 %v309, 1e-16
  %v356 = vmax.f32 %v312, 1e-16
  %v357 = vmax.f32 %v315, 1e-16
  %v358 = vmax.f32 %v318, 1e-16
  %v359 = vmax.f32 %v321, 1e-16
  %v360 = vmax.f32 %v324, 1e-16
  %v361 = vmax.f32 %v327, 1e-16
  %v362 = vmax.f32 %v330, 1e-16
  %v363 = vmax.f32 %v333, 1e-16
  %v364 = vmax.f32 %v336, 1e-16
  %v365 = vmax.f32 %v339, 1e-16
  %v366 = vmax.f32 %v342, 1e-16
  %v367 = vmax.f32 %v345, 1e-16
  %v368 = vmax.f32 %v348, 1e-16
  %v369 = vmax.f32 %v351, 1e-16
  %v370 = vmax.f32 %v354, 1e-16
  %v371 = vrsqrt.pop %v355
  %v372 = vrsqrt.pop %v356
  %v373 = vrsqrt.pop %v357
  %v374 = vrsqrt.pop %v358
  %v375 = vrsqrt.pop %v359
  %v376 = vrsqrt.pop %v360
  %v377 = vrsqrt.pop %v361
  %v378 = vrsqrt.pop %v362
  %v379 = vrsqrt.pop %v363
  %v380 = vrsqrt.pop %v364
  %v381 = vrsqrt.pop %v365
  %v382 = vrsqrt.pop %v366
  %v383 = vrsqrt.pop %v367
  %v384 = vrsqrt.pop %v368
  %v385 = vrsqrt.pop %v369
  %v386 = vrsqrt.pop %v370
  %v387 = vmul.f32 %v50, %v371
  %v388 = vmul.f32 %v51, %v372
  %v389 = vmul.f32 %v52, %v373
  %v390 = vmul.f32 %v53, %v374
  %v391 = vmul.f32 %v54, %v375
  %v392 = vmul.f32 %v55, %v376
  %v393 = vmul.f32 %v56, %v377
  %v394 = vmul.f32 %v57, %v378
  %v395 = vmul.f32 %v58, %v379
  %v396 = vmul.f32 %v59, %v380
  %v397 = vmul.f32 %v60, %v381
  %v398 = vmul.f32 %v61, %v382
  %v399 = vmul.f32 %v62, %v383
  %v400 = vmul.f32 %v63, %v384
  %v401 = vmul.f32 %v64, %v385
  %v402 = vmul.f32 %v65, %v386
  %v403 = vpack.c.bf16 %v164, %v163
  %v404 = vpack.c.bf16 %v166, %v165
  %v405 = vpack.c.bf16 %v168, %v167
  %v406 = vpack.c.bf16 %v170, %v169
  %v407 = vpack.c.bf16 %v172, %v171
  %v408 = vpack.c.bf16 %v174, %v173
  %v409 = vpack.c.bf16 %v176, %v175
  %v410 = vpack.c.bf16 %v178, %v177
  %v411 = vpack.c.bf16 %v276, %v275
  %v412 = vpack.c.bf16 %v278, %v277
  %v413 = vpack.c.bf16 %v280, %v279
  %v414 = vpack.c.bf16 %v282, %v281
  %v415 = vpack.c.bf16 %v284, %v283
  %v416 = vpack.c.bf16 %v286, %v285
  %v417 = vpack.c.bf16 %v288, %v287
  %v418 = vpack.c.bf16 %v290, %v289
  %v419 = vpack.c.bf16 %v388, %v387
  %v420 = vpack.c.bf16 %v390, %v389
  %v421 = vpack.c.bf16 %v392, %v391
  %v422 = vpack.c.bf16 %v394, %v393
  %v423 = vpack.c.bf16 %v396, %v395
  %v424 = vpack.c.bf16 %v398, %v397
  %v425 = vpack.c.bf16 %v400, %v399
  %v426 = vpack.c.bf16 %v402, %v401
  %v428 = vsel %vm82, %v403, 0
  %v431 = vsel %vm82, %v404, 0
  %v434 = vsel %vm82, %v405, 0
  %v437 = vsel %vm82, %v406, 0
  %v440 = vsel %vm82, %v407, 0
  %v443 = vsel %vm82, %v408, 0
  %v446 = vsel %vm82, %v409, 0
  %v449 = vsel %vm82, %v410, 0
  %v452 = vsel %vm82, %v419, 0
  %v455 = vsel %vm82, %v420, 0
  %v458 = vsel %vm82, %v421, 0
  %v461 = vsel %vm82, %v422, 0
  %v464 = vsel %vm82, %v423, 0
  %v467 = vsel %vm82, %v424, 0
  %v470 = vsel %vm82, %v425, 0
  %v473 = vsel %vm82, %v426, 0
  %475 = vmatprep.subr.bf16.mxu0 0
  %476 = vmatpush1.bf16.xpose.msra.mxu0 %v452
  %477 = vmatprep.subr.bf16.mxu0 0
  %478 = vmatpush1.bf16.xpose.msra.mxu0 %v455
  %479 = vmatprep.subr.bf16.mxu0 0
  %480 = vmatpush1.bf16.xpose.msra.mxu0 %v458
  %481 = vmatprep.subr.bf16.mxu0 0
  %482 = vmatpush1.bf16.xpose.msra.mxu0 %v461
  %483 = vmatprep.subr.bf16.mxu0 0
  %484 = vmatpush1.bf16.xpose.msra.mxu0 %v464
  %485 = vmatprep.subr.bf16.mxu0 0
  %486 = vmatpush1.bf16.xpose.msra.mxu0 %v467
  %487 = vmatprep.subr.bf16.mxu0 0
  %488 = vmatpush1.bf16.xpose.msra.mxu0 %v470
  %489 = vmatprep.subr.bf16.mxu0 0
  %490 = vmatpush1.bf16.xpose.msra.mxu0 %v473
  %491 = vmatprep.subr.bf16.mxu0 0
  %492 = vmatpush1.bf16.xpose.msra.mxu0 0
  %493 = vmatprep.subr.bf16.mxu0 0
  %494 = vmatpush1.bf16.xpose.msra.mxu0 0
  %495 = vmatprep.subr.bf16.mxu0 0
  %496 = vmatpush1.bf16.xpose.msra.mxu0 0
  %497 = vmatprep.subr.bf16.mxu0 0
  %498 = vmatpush1.bf16.xpose.msra.mxu0 0
  %499 = vmatprep.subr.bf16.mxu0 0
  %500 = vmatpush1.bf16.xpose.msra.mxu0 0
  %501 = vmatprep.subr.bf16.mxu0 0
  %502 = vmatpush1.bf16.xpose.msra.mxu0 0
  %503 = vmatprep.subr.bf16.mxu0 0
  %504 = vmatpush1.bf16.xpose.msra.mxu0 0
  %505 = vmatprep.subr.bf16.mxu0 0
  %506 = vmatpush1.bf16.xpose.msra.mxu0 0
  %507 = vmatprep.mubr.bf16.mxu0 0
  %508 = vmatmul.mubr.bf16.gmra.mrb[0].mxu0 %v428
  %v509 = vpop.f32.mrb[0].mxu0
  %v510 = vadd.f32 0.0, %v509
  %v511 = vpop.f32.mrb[0].mxu0
  %v512 = vpop.f32.mrb[0].mxu0
  %v513 = vadd.f32 0.0, %v512
  %v514 = vpop.f32.mrb[0].mxu0
  %515 = vmatprep.mubr.bf16.mxu0 0
  %516 = vmatmul.mubr.bf16.gmra.mrb[0].mxu0 %v431
  %v517 = vpop.f32.mrb[0].mxu0
  %v518 = vadd.f32 0.0, %v517
  %v519 = vpop.f32.mrb[0].mxu0
  %v520 = vpop.f32.mrb[0].mxu0
  %v521 = vadd.f32 0.0, %v520
  %v522 = vpop.f32.mrb[0].mxu0
  %523 = vmatprep.mubr.bf16.mxu0 0
  %524 = vmatmul.mubr.bf16.gmra.mrb[0].mxu0 %v434
  %v525 = vpop.f32.mrb[0].mxu0
  %v526 = vadd.f32 0.0, %v525
  %v527 = vpop.f32.mrb[0].mxu0
  %v528 = vpop.f32.mrb[0].mxu0
  %v529 = vadd.f32 0.0, %v528
  %v530 = vpop.f32.mrb[0].mxu0
  %531 = vmatprep.mubr.bf16.mxu0 0
  %532 = vmatmul.mubr.bf16.gmra.mrb[0].mxu0 %v437
  %v533 = vpop.f32.mrb[0].mxu0
  %v534 = vadd.f32 0.0, %v533
  %v535 = vpop.f32.mrb[0].mxu0
  %v536 = vpop.f32.mrb[0].mxu0
  %v537 = vadd.f32 0.0, %v536
  %v538 = vpop.f32.mrb[0].mxu0
  %539 = vmatprep.mubr.bf16.mxu0 0
  %540 = vmatmul.mubr.bf16.gmra.mrb[0].mxu0 %v440
  %v541 = vpop.f32.mrb[0].mxu0
  %v542 = vadd.f32 0.0, %v541
  %v543 = vpop.f32.mrb[0].mxu0
  %v544 = vpop.f32.mrb[0].mxu0
  %v545 = vadd.f32 0.0, %v544
  %v546 = vpop.f32.mrb[0].mxu0
  %547 = vmatprep.mubr.bf16.mxu0 0
  %548 = vmatmul.mubr.bf16.gmra.mrb[0].mxu0 %v443
  %v549 = vpop.f32.mrb[0].mxu0
  %v550 = vadd.f32 0.0, %v549
  %v551 = vpop.f32.mrb[0].mxu0
  %v552 = vpop.f32.mrb[0].mxu0
  %v553 = vadd.f32 0.0, %v552
  %v554 = vpop.f32.mrb[0].mxu0
  %555 = vmatprep.mubr.bf16.mxu0 0
  %556 = vmatmul.mubr.bf16.gmra.mrb[0].mxu0 %v446
  %v557 = vpop.f32.mrb[0].mxu0
  %v558 = vadd.f32 0.0, %v557
  %v559 = vpop.f32.mrb[0].mxu0
  %v560 = vpop.f32.mrb[0].mxu0
  %v561 = vadd.f32 0.0, %v560
  %v562 = vpop.f32.mrb[0].mxu0
  %563 = vmatprep.mubr.bf16.mxu0 0
  %564 = vmatmul.mubr.bf16.gmra.mrb[0].mxu0 %v449
  %v565 = vpop.f32.mrb[0].mxu0
  %v566 = vadd.f32 0.0, %v565
  %v567 = vpop.f32.mrb[0].mxu0
  %v568 = vpop.f32.mrb[0].mxu0
  %v569 = vadd.f32 0.0, %v568
  %v570 = vpop.f32.mrb[0].mxu0
  %571 = vdwg.mxu0
  %v572 = vmul.f32 %v510, 2.0
  %v573 = vmul.f32 %v513, 2.0
  %v574 = vmul.f32 %v518, 2.0
  %v575 = vmul.f32 %v521, 2.0
  %v576 = vmul.f32 %v526, 2.0
  %v577 = vmul.f32 %v529, 2.0
  %v578 = vmul.f32 %v534, 2.0
  %v579 = vmul.f32 %v537, 2.0
  %v580 = vmul.f32 %v542, 2.0
  %v581 = vmul.f32 %v545, 2.0
  %v582 = vmul.f32 %v550, 2.0
  %v583 = vmul.f32 %v553, 2.0
  %v584 = vmul.f32 %v558, 2.0
  %v585 = vmul.f32 %v561, 2.0
  %v586 = vmul.f32 %v566, 2.0
  %v587 = vmul.f32 %v569, 2.0
  %v588 = vmul.f32 %v572, 1.442695
  %v589 = vpow.pop %v588
  %v590 = vmul.f32 %v573, 1.442695
  %v591 = vpow.pop %v590
  %v592 = vmul.f32 %v574, 1.442695
  %v593 = vpow.pop %v592
  %v594 = vmul.f32 %v575, 1.442695
  %v595 = vpow.pop %v594
  %v596 = vmul.f32 %v576, 1.442695
  %v597 = vpow.pop %v596
  %v598 = vmul.f32 %v577, 1.442695
  %v599 = vpow.pop %v598
  %v600 = vmul.f32 %v578, 1.442695
  %v601 = vpow.pop %v600
  %v602 = vmul.f32 %v579, 1.442695
  %v603 = vpow.pop %v602
  %v604 = vmul.f32 %v580, 1.442695
  %v605 = vpow.pop %v604
  %v606 = vmul.f32 %v581, 1.442695
  %v607 = vpow.pop %v606
  %v608 = vmul.f32 %v582, 1.442695
  %v609 = vpow.pop %v608
  %v610 = vmul.f32 %v583, 1.442695
  %v611 = vpow.pop %v610
  %v612 = vmul.f32 %v584, 1.442695
  %v613 = vpow.pop %v612
  %v614 = vmul.f32 %v585, 1.442695
  %v615 = vpow.pop %v614
  %v616 = vmul.f32 %v586, 1.442695
  %v617 = vpow.pop %v616
  %v618 = vmul.f32 %v587, 1.442695
  %v619 = vpow.pop %v618
  %v621 = vsel %vm82, %v411, 0
  %v624 = vsel %vm82, %v412, 0
  %v627 = vsel %vm82, %v413, 0
  %v630 = vsel %vm82, %v414, 0
  %v633 = vsel %vm82, %v415, 0
  %v636 = vsel %vm82, %v416, 0
  %v639 = vsel %vm82, %v417, 0
  %v642 = vsel %vm82, %v418, 0
  %644 = vmatprep.subr.bf16.mxu0 0
  %645 = vmatpush1.bf16.xpose.msra.mxu0 %v621
  %646 = vmatprep.subr.bf16.mxu0 0
  %647 = vmatpush1.bf16.xpose.msra.mxu0 %v624
  %648 = vmatprep.subr.bf16.mxu0 0
  %649 = vmatpush1.bf16.xpose.msra.mxu0 %v627
  %650 = vmatprep.subr.bf16.mxu0 0
  %651 = vmatpush1.bf16.xpose.msra.mxu0 %v630
  %652 = vmatprep.subr.bf16.mxu0 0
  %653 = vmatpush1.bf16.xpose.msra.mxu0 %v633
  %654 = vmatprep.subr.bf16.mxu0 0
  %655 = vmatpush1.bf16.xpose.msra.mxu0 %v636
  %656 = vmatprep.subr.bf16.mxu0 0
  %657 = vmatpush1.bf16.xpose.msra.mxu0 %v639
  %658 = vmatprep.subr.bf16.mxu0 0
  %659 = vmatpush1.bf16.xpose.msra.mxu0 %v642
  %660 = vmatprep.subr.bf16.mxu0 0
  %661 = vmatpush1.bf16.xpose.msra.mxu0 0
  %662 = vmatprep.subr.bf16.mxu0 0
  %663 = vmatpush1.bf16.xpose.msra.mxu0 0
  %664 = vmatprep.subr.bf16.mxu0 0
  %665 = vmatpush1.bf16.xpose.msra.mxu0 0
  %666 = vmatprep.subr.bf16.mxu0 0
  %667 = vmatpush1.bf16.xpose.msra.mxu0 0
  %668 = vmatprep.subr.bf16.mxu0 0
  %669 = vmatpush1.bf16.xpose.msra.mxu0 0
  %670 = vmatprep.subr.bf16.mxu0 0
  %671 = vmatpush1.bf16.xpose.msra.mxu0 0
  %672 = vmatprep.subr.bf16.mxu0 0
  %673 = vmatpush1.bf16.xpose.msra.mxu0 0
  %674 = vmatprep.subr.bf16.mxu0 0
  %675 = vmatpush1.bf16.xpose.msra.mxu0 0
  %676 = vmatprep.mubr.bf16.mxu0 0
  %677 = vmatmul.mubr.bf16.gmra.mrb[0].mxu0 %v428
  %v678 = vpop.f32.mrb[0].mxu0
  %v679 = vadd.f32 0.0, %v678
  %v680 = vpop.f32.mrb[0].mxu0
  %v681 = vpop.f32.mrb[0].mxu0
  %v682 = vadd.f32 0.0, %v681
  %v683 = vpop.f32.mrb[0].mxu0
  %684 = vmatprep.mubr.bf16.mxu0 0
  %685 = vmatmul.mubr.bf16.gmra.mrb[0].mxu0 %v431
  %v686 = vpop.f32.mrb[0].mxu0
  %v687 = vadd.f32 0.0, %v686
  %v688 = vpop.f32.mrb[0].mxu0
  %v689 = vpop.f32.mrb[0].mxu0
  %v690 = vadd.f32 0.0, %v689
  %v691 = vpop.f32.mrb[0].mxu0
  %692 = vmatprep.mubr.bf16.mxu0 0
  %693 = vmatmul.mubr.bf16.gmra.mrb[0].mxu0 %v434
  %v694 = vpop.f32.mrb[0].mxu0
  %v695 = vadd.f32 0.0, %v694
  %v696 = vpop.f32.mrb[0].mxu0
  %v697 = vpop.f32.mrb[0].mxu0
  %v698 = vadd.f32 0.0, %v697
  %v699 = vpop.f32.mrb[0].mxu0
  %700 = vmatprep.mubr.bf16.mxu0 0
  %701 = vmatmul.mubr.bf16.gmra.mrb[0].mxu0 %v437
  %v702 = vpop.f32.mrb[0].mxu0
  %v703 = vadd.f32 0.0, %v702
  %v704 = vpop.f32.mrb[0].mxu0
  %v705 = vpop.f32.mrb[0].mxu0
  %v706 = vadd.f32 0.0, %v705
  %v707 = vpop.f32.mrb[0].mxu0
  %708 = vmatprep.mubr.bf16.mxu0 0
  %709 = vmatmul.mubr.bf16.gmra.mrb[0].mxu0 %v440
  %v710 = vpop.f32.mrb[0].mxu0
  %v711 = vadd.f32 0.0, %v710
  %v712 = vpop.f32.mrb[0].mxu0
  %v713 = vpop.f32.mrb[0].mxu0
  %v714 = vadd.f32 0.0, %v713
  %v715 = vpop.f32.mrb[0].mxu0
  %716 = vmatprep.mubr.bf16.mxu0 0
  %717 = vmatmul.mubr.bf16.gmra.mrb[0].mxu0 %v443
  %v718 = vpop.f32.mrb[0].mxu0
  %v719 = vadd.f32 0.0, %v718
  %v720 = vpop.f32.mrb[0].mxu0
  %v721 = vpop.f32.mrb[0].mxu0
  %v722 = vadd.f32 0.0, %v721
  %v723 = vpop.f32.mrb[0].mxu0
  %724 = vmatprep.mubr.bf16.mxu0 0
  %725 = vmatmul.mubr.bf16.gmra.mrb[0].mxu0 %v446
  %v726 = vpop.f32.mrb[0].mxu0
  %v727 = vadd.f32 0.0, %v726
  %v728 = vpop.f32.mrb[0].mxu0
  %v729 = vpop.f32.mrb[0].mxu0
  %v730 = vadd.f32 0.0, %v729
  %v731 = vpop.f32.mrb[0].mxu0
  %732 = vmatprep.mubr.bf16.mxu0 0
  %733 = vmatmul.mubr.bf16.gmra.mrb[0].mxu0 %v449
  %v734 = vpop.f32.mrb[0].mxu0
  %v735 = vadd.f32 0.0, %v734
  %v736 = vpop.f32.mrb[0].mxu0
  %v737 = vpop.f32.mrb[0].mxu0
  %v738 = vadd.f32 0.0, %v737
  %v739 = vpop.f32.mrb[0].mxu0
  %740 = vdwg.mxu0
  %v741 = vmul.f32 %v679, 2.0
  %v742 = vmul.f32 %v682, 2.0
  %v743 = vmul.f32 %v687, 2.0
  %v744 = vmul.f32 %v690, 2.0
  %v745 = vmul.f32 %v695, 2.0
  %v746 = vmul.f32 %v698, 2.0
  %v747 = vmul.f32 %v703, 2.0
  %v748 = vmul.f32 %v706, 2.0
  %v749 = vmul.f32 %v711, 2.0
  %v750 = vmul.f32 %v714, 2.0
  %v751 = vmul.f32 %v719, 2.0
  %v752 = vmul.f32 %v722, 2.0
  %v753 = vmul.f32 %v727, 2.0
  %v754 = vmul.f32 %v730, 2.0
  %v755 = vmul.f32 %v735, 2.0
  %v756 = vmul.f32 %v738, 2.0
  %v757 = vmul.f32 %v741, 1.442695
  %v758 = vpow.pop %v757
  %v759 = vmul.f32 %v742, 1.442695
  %v760 = vpow.pop %v759
  %v761 = vmul.f32 %v743, 1.442695
  %v762 = vpow.pop %v761
  %v763 = vmul.f32 %v744, 1.442695
  %v764 = vpow.pop %v763
  %v765 = vmul.f32 %v745, 1.442695
  %v766 = vpow.pop %v765
  %v767 = vmul.f32 %v746, 1.442695
  %v768 = vpow.pop %v767
  %v769 = vmul.f32 %v747, 1.442695
  %v770 = vpow.pop %v769
  %v771 = vmul.f32 %v748, 1.442695
  %v772 = vpow.pop %v771
  %v773 = vmul.f32 %v749, 1.442695
  %v774 = vpow.pop %v773
  %v775 = vmul.f32 %v750, 1.442695
  %v776 = vpow.pop %v775
  %v777 = vmul.f32 %v751, 1.442695
  %v778 = vpow.pop %v777
  %v779 = vmul.f32 %v752, 1.442695
  %v780 = vpow.pop %v779
  %v781 = vmul.f32 %v753, 1.442695
  %v782 = vpow.pop %v781
  %v783 = vmul.f32 %v754, 1.442695
  %v784 = vpow.pop %v783
  %v785 = vmul.f32 %v755, 1.442695
  %v786 = vpow.pop %v785
  %v787 = vmul.f32 %v756, 1.442695
  %v788 = vpow.pop %v787
  %v789 = vadd.f32 %v589, %v758
  %v790 = vadd.f32 %v591, %v760
  %v791 = vadd.f32 %v593, %v762
  %v792 = vadd.f32 %v595, %v764
  %v793 = vadd.f32 %v597, %v766
  %v794 = vadd.f32 %v599, %v768
  %v795 = vadd.f32 %v601, %v770
  %v796 = vadd.f32 %v603, %v772
  %v797 = vadd.f32 %v605, %v774
  %v798 = vadd.f32 %v607, %v776
  %v799 = vadd.f32 %v609, %v778
  %v800 = vadd.f32 %v611, %v780
  %v801 = vadd.f32 %v613, %v782
  %v802 = vadd.f32 %v615, %v784
  %v803 = vadd.f32 %v617, %v786
  %v804 = vadd.f32 %v619, %v788
  %805 = vadd.xlane.f32.xlu0 %v789
  %v806 = vpop.xlane.xlu0 %805
  %807 = vadd.xlane.f32.xlu0 %v790
  %v808 = vpop.xlane.xlu0 %807
  %809 = vadd.xlane.f32.xlu0 %v791
  %v810 = vpop.xlane.xlu0 %809
  %811 = vadd.xlane.f32.xlu0 %v792
  %v812 = vpop.xlane.xlu0 %811
  %813 = vadd.xlane.f32.xlu0 %v793
  %v814 = vpop.xlane.xlu0 %813
  %815 = vadd.xlane.f32.xlu0 %v794
  %v816 = vpop.xlane.xlu0 %815
  %817 = vadd.xlane.f32.xlu0 %v795
  %v818 = vpop.xlane.xlu0 %817
  %819 = vadd.xlane.f32.xlu0 %v796
  %v820 = vpop.xlane.xlu0 %819
  %821 = vadd.xlane.f32.xlu0 %v797
  %v822 = vpop.xlane.xlu0 %821
  %823 = vadd.xlane.f32.xlu0 %v798
  %v824 = vpop.xlane.xlu0 %823
  %825 = vadd.xlane.f32.xlu0 %v799
  %v826 = vpop.xlane.xlu0 %825
  %827 = vadd.xlane.f32.xlu0 %v800
  %v828 = vpop.xlane.xlu0 %827
  %829 = vadd.xlane.f32.xlu0 %v801
  %v830 = vpop.xlane.xlu0 %829
  %831 = vadd.xlane.f32.xlu0 %v802
  %v832 = vpop.xlane.xlu0 %831
  %833 = vadd.xlane.f32.xlu0 %v803
  %v834 = vpop.xlane.xlu0 %833
  %835 = vadd.xlane.f32.xlu0 %v804
  %v836 = vpop.xlane.xlu0 %835
  %p837 = scmp.eq.s32.totalorder 0, 0
  // Predicated region
  $region18: #{tpu_custom_call.1} parent=0 // pred_check
    %p838 = pneg %p837
  $region19: #{tpu_custom_call.1} parent=0 // pred_check_branch
    %840 = sbr.rel (%p838) target = $region21
  $region20: #{tpu_custom_call.1} parent=0 // pred_region
    %vm841 = vcmask 7168
    %842 = vst.msk [vmem:[#allocation2] sm:$0xff] %vm841, 0.0
    %843 = vst.msk [vmem:[#allocation2 + $0x8] sm:$0xff] %vm841, 0.0
    %844 = vst.msk [vmem:[#allocation2 + $0x10] sm:$0xff] %vm841, 0.0
    %845 = vst.msk [vmem:[#allocation2 + $0x18] sm:$0xff] %vm841, 0.0
    %846 = vst.msk [vmem:[#allocation2 + $0x20] sm:$0xff] %vm841, 0.0
    %847 = vst.msk [vmem:[#allocation2 + $0x28] sm:$0xff] %vm841, 0.0
    %848 = vst.msk [vmem:[#allocation2 + $0x30] sm:$0xff] %vm841, 0.0
    %849 = vst.msk [vmem:[#allocation2 + $0x38] sm:$0xff] %vm841, 0.0
    %850 = vst.msk [vmem:[#allocation2 + $0x40] sm:$0xff] %vm841, 0.0
    %851 = vst.msk [vmem:[#allocation2 + $0x48] sm:$0xff] %vm841, 0.0
    %852 = vst.msk [vmem:[#allocation2 + $0x50] sm:$0xff] %vm841, 0.0
    %853 = vst.msk [vmem:[#allocation2 + $0x58] sm:$0xff] %vm841, 0.0
    %854 = vst.msk [vmem:[#allocation2 + $0x60] sm:$0xff] %vm841, 0.0
    %855 = vst.msk [vmem:[#allocation2 + $0x68] sm:$0xff] %vm841, 0.0
    %856 = vst.msk [vmem:[#allocation2 + $0x70] sm:$0xff] %vm841, 0.0
    %857 = vst.msk [vmem:[#allocation2 + $0x78] sm:$0xff] %vm841, 0.0
  $region21: #{tpu_custom_call.1} parent=0 // pred_fallthru
    _
  %v858 = vld [vmem:[#allocation2] sm:$0xff]
  %v859 = vld [vmem:[#allocation2 + $0x8] sm:$0xff]
  %v860 = vld [vmem:[#allocation2 + $0x10] sm:$0xff]
  %v861 = vld [vmem:[#allocation2 + $0x18] sm:$0xff]
  %v862 = vld [vmem:[#allocation2 + $0x20] sm:$0xff]
  %v863 = vld [vmem:[#allocation2 + $0x28] sm:$0xff]
  %v864 = vld [vmem:[#allocation2 + $0x30] sm:$0xff]
  %v865 = vld [vmem:[#allocation2 + $0x38] sm:$0xff]
  %v866 = vld [vmem:[#allocation2 + $0x40] sm:$0xff]
  %v867 = vld [vmem:[#allocation2 + $0x48] sm:$0xff]
  %v868 = vld [vmem:[#allocation2 + $0x50] sm:$0xff]
  %v869 = vld [vmem:[#allocation2 + $0x58] sm:$0xff]
  %v870 = vld [vmem:[#allocation2 + $0x60] sm:$0xff]
  %v871 = vld [vmem:[#allocation2 + $0x68] sm:$0xff]
  %v872 = vld [vmem:[#allocation2 + $0x70] sm:$0xff]
  %v873 = vld [vmem:[#allocation2 + $0x78] sm:$0xff]
  %v874 = vadd.f32 %v858, %v806
  %v875 = vadd.f32 %v859, %v808
  %v876 = vadd.f32 %v860, %v810
  %v877 = vadd.f32 %v861, %v812
  %v878 = vadd.f32 %v862, %v814
  %v879 = vadd.f32 %v863, %v816
  %v880 = vadd.f32 %v864, %v818
  %v881 = vadd.f32 %v865, %v820
  %v882 = vadd.f32 %v866, %v822
  %v883 = vadd.f32 %v867, %v824
  %v884 = vadd.f32 %v868, %v826
  %v885 = vadd.f32 %v869, %v828
  %v886 = vadd.f32 %v870, %v830
  %v887 = vadd.f32 %v871, %v832
  %v888 = vadd.f32 %v872, %v834
  %v889 = vadd.f32 %v873, %v836
  %vm890 = vcmask 7168
  %891 = vst.msk [vmem:[#allocation2] sm:$0xff] %vm890, %v874
  %892 = vst.msk [vmem:[#allocation2 + $0x8] sm:$0xff] %vm890, %v875
  %893 = vst.msk [vmem:[#allocation2 + $0x10] sm:$0xff] %vm890, %v876
  %894 = vst.msk [vmem:[#allocation2 + $0x18] sm:$0xff] %vm890, %v877
  %895 = vst.msk [vmem:[#allocation2 + $0x20] sm:$0xff] %vm890, %v878
  %896 = vst.msk [vmem:[#allocation2 + $0x28] sm:$0xff] %vm890, %v879
  %897 = vst.msk [vmem:[#allocation2 + $0x30] sm:$0xff] %vm890, %v880
  %898 = vst.msk [vmem:[#allocation2 + $0x38] sm:$0xff] %vm890, %v881
  %899 = vst.msk [vmem:[#allocation2 + $0x40] sm:$0xff] %vm890, %v882
  %900 = vst.msk [vmem:[#allocation2 + $0x48] sm:$0xff] %vm890, %v883
  %901 = vst.msk [vmem:[#allocation2 + $0x50] sm:$0xff] %vm890, %v884
  %902 = vst.msk [vmem:[#allocation2 + $0x58] sm:$0xff] %vm890, %v885
  %903 = vst.msk [vmem:[#allocation2 + $0x60] sm:$0xff] %vm890, %v886
  %904 = vst.msk [vmem:[#allocation2 + $0x68] sm:$0xff] %vm890, %v887
  %905 = vst.msk [vmem:[#allocation2 + $0x70] sm:$0xff] %vm890, %v888
  %906 = vst.msk [vmem:[#allocation2 + $0x78] sm:$0xff] %vm890, %v889
  // Predicated region
  $region22: #{tpu_custom_call.1} parent=0 // pred_check
    %p907 = pneg %p837
  $region23: #{tpu_custom_call.1} parent=0 // pred_check_branch
    %909 = sbr.rel (%p907) target = $region25
  $region24: #{tpu_custom_call.1} parent=0 // pred_region
    %v910 = vld [vmem:[%s1] sm:$0xff]
    %v911 = vld [vmem:[%s1 + $0x8] sm:$0xff]
    %v912 = vld [vmem:[%s1 + $0x10] sm:$0xff]
    %v913 = vld [vmem:[%s1 + $0x18] sm:$0xff]
    %v914 = vld [vmem:[%s1 + $0x20] sm:$0xff]
    %v915 = vld [vmem:[%s1 + $0x28] sm:$0xff]
    %v916 = vld [vmem:[%s1 + $0x30] sm:$0xff]
    %v917 = vld [vmem:[%s1 + $0x38] sm:$0xff]
    %v918 = vld [vmem:[%s1 + $0x40] sm:$0xff]
    %v919 = vld [vmem:[%s1 + $0x48] sm:$0xff]
    %v920 = vld [vmem:[%s1 + $0x50] sm:$0xff]
    %v921 = vld [vmem:[%s1 + $0x58] sm:$0xff]
    %v922 = vld [vmem:[%s1 + $0x60] sm:$0xff]
    %v923 = vld [vmem:[%s1 + $0x68] sm:$0xff]
    %v924 = vld [vmem:[%s1 + $0x70] sm:$0xff]
    %v925 = vld [vmem:[%s1 + $0x78] sm:$0xff]
    %v926 = vmul.f32 %v910, %v910
    %v927 = vmul.f32 %v911, %v911
    %v928 = vmul.f32 %v912, %v912
    %v929 = vmul.f32 %v913, %v913
    %v930 = vmul.f32 %v914, %v914
    %v931 = vmul.f32 %v915, %v915
    %v932 = vmul.f32 %v916, %v916
    %v933 = vmul.f32 %v917, %v917
    %v934 = vmul.f32 %v918, %v918
    %v935 = vmul.f32 %v919, %v919
    %v936 = vmul.f32 %v920, %v920
    %v937 = vmul.f32 %v921, %v921
    %v938 = vmul.f32 %v922, %v922
    %v939 = vmul.f32 %v923, %v923
    %v940 = vmul.f32 %v924, %v924
    %v941 = vmul.f32 %v925, %v925
    %v942 = vsel %vm82, %v926, 0.0
    %943 = vadd.xlane.f32.xlu0 %v942
    %v944 = vpop.xlane.xlu0 %943
    %v945 = vsel %vm82, %v927, 0.0
    %946 = vadd.xlane.f32.xlu0 %v945
    %v947 = vpop.xlane.xlu0 %946
    %v948 = vsel %vm82, %v928, 0.0
    %949 = vadd.xlane.f32.xlu0 %v948
    %v950 = vpop.xlane.xlu0 %949
    %v951 = vsel %vm82, %v929, 0.0
    %952 = vadd.xlane.f32.xlu0 %v951
    %v953 = vpop.xlane.xlu0 %952
    %v954 = vsel %vm82, %v930, 0.0
    %955 = vadd.xlane.f32.xlu0 %v954
    %v956 = vpop.xlane.xlu0 %955
    %v957 = vsel %vm82, %v931, 0.0
    %958 = vadd.xlane.f32.xlu0 %v957
    %v959 = vpop.xlane.xlu0 %958
    %v960 = vsel %vm82, %v932, 0.0
    %961 = vadd.xlane.f32.xlu0 %v960
    %v962 = vpop.xlane.xlu0 %961
    %v963 = vsel %vm82, %v933, 0.0
    %964 = vadd.xlane.f32.xlu0 %v963
    %v965 = vpop.xlane.xlu0 %964
    %v966 = vsel %vm82, %v934, 0.0
    %967 = vadd.xlane.f32.xlu0 %v966
    %v968 = vpop.xlane.xlu0 %967
    %v969 = vsel %vm82, %v935, 0.0
    %970 = vadd.xlane.f32.xlu0 %v969
    %v971 = vpop.xlane.xlu0 %970
    %v972 = vsel %vm82, %v936, 0.0
    %973 = vadd.xlane.f32.xlu0 %v972
    %v974 = vpop.xlane.xlu0 %973
    %v975 = vsel %vm82, %v937, 0.0
    %976 = vadd.xlane.f32.xlu0 %v975
    %v977 = vpop.xlane.xlu0 %976
    %v978 = vsel %vm82, %v938, 0.0
    %979 = vadd.xlane.f32.xlu0 %v978
    %v980 = vpop.xlane.xlu0 %979
    %v981 = vsel %vm82, %v939, 0.0
    %982 = vadd.xlane.f32.xlu0 %v981
    %v983 = vpop.xlane.xlu0 %982
    %v984 = vsel %vm82, %v940, 0.0
    %985 = vadd.xlane.f32.xlu0 %v984
    %v986 = vpop.xlane.xlu0 %985
    %v987 = vsel %vm82, %v941, 0.0
    %988 = vadd.xlane.f32.xlu0 %v987
    %v989 = vpop.xlane.xlu0 %988
    %v990 = vmax.f32 %v944, 1e-16
    %v991 = vmax.f32 %v947, 1e-16
    %v992 = vmax.f32 %v950, 1e-16
    %v993 = vmax.f32 %v953, 1e-16
    %v994 = vmax.f32 %v956, 1e-16
    %v995 = vmax.f32 %v959, 1e-16
    %v996 = vmax.f32 %v962, 1e-16
    %v997 = vmax.f32 %v965, 1e-16
    %v998 = vmax.f32 %v968, 1e-16
    %v999 = vmax.f32 %v971, 1e-16
    %v1000 = vmax.f32 %v974, 1e-16
    %v1001 = vmax.f32 %v977, 1e-16
    %v1002 = vmax.f32 %v980, 1e-16
    %v1003 = vmax.f32 %v983, 1e-16
    %v1004 = vmax.f32 %v986, 1e-16
    %v1005 = vmax.f32 %v989, 1e-16
    %v1006 = vrsqrt.pop %v990
    %v1007 = vrsqrt.pop %v991
    %v1008 = vrsqrt.pop %v992
    %v1009 = vrsqrt.pop %v993
    %v1010 = vrsqrt.pop %v994
    %v1011 = vrsqrt.pop %v995
    %v1012 = vrsqrt.pop %v996
    %v1013 = vrsqrt.pop %v997
    %v1014 = vrsqrt.pop %v998
    %v1015 = vrsqrt.pop %v999
    %v1016 = vrsqrt.pop %v1000
    %v1017 = vrsqrt.pop %v1001
    %v1018 = vrsqrt.pop %v1002
    %v1019 = vrsqrt.pop %v1003
    %v1020 = vrsqrt.pop %v1004
    %v1021 = vrsqrt.pop %v1005
    %v1022 = vmul.f32 %v910, %v1006
    %v1023 = vmul.f32 %v911, %v1007
    %v1024 = vmul.f32 %v912, %v1008
    %v1025 = vmul.f32 %v913, %v1009
    %v1026 = vmul.f32 %v914, %v1010
    %v1027 = vmul.f32 %v915, %v1011
    %v1028 = vmul.f32 %v916, %v1012
    %v1029 = vmul.f32 %v917, %v1013
    %v1030 = vmul.f32 %v918, %v1014
    %v1031 = vmul.f32 %v919, %v1015
    %v1032 = vmul.f32 %v920, %v1016
    %v1033 = vmul.f32 %v921, %v1017
    %v1034 = vmul.f32 %v922, %v1018
    %v1035 = vmul.f32 %v923, %v1019
    %v1036 = vmul.f32 %v924, %v1020
    %v1037 = vmul.f32 %v925, %v1021
    %v1038 = vmul.f32 %v163, %v1022
    %v1039 = vmul.f32 %v164, %v1023
    %v1040 = vmul.f32 %v165, %v1024
    %v1041 = vmul.f32 %v166, %v1025
    %v1042 = vmul.f32 %v167, %v1026
    %v1043 = vmul.f32 %v168, %v1027
    %v1044 = vmul.f32 %v169, %v1028
    %v1045 = vmul.f32 %v170, %v1029
    %v1046 = vmul.f32 %v171, %v1030
    %v1047 = vmul.f32 %v172, %v1031
    %v1048 = vmul.f32 %v173, %v1032
    %v1049 = vmul.f32 %v174, %v1033
    %v1050 = vmul.f32 %v175, %v1034
    %v1051 = vmul.f32 %v176, %v1035
    %v1052 = vmul.f32 %v177, %v1036
    %v1053 = vmul.f32 %v178, %v1037
    %v1054 = vsel %vm82, %v1038, 0.0
    %1055 = vadd.xlane.f32.xlu0 %v1054
    %v1056 = vpop.xlane.xlu0 %1055
    %v1057 = vsel %vm82, %v1039, 0.0
    %1058 = vadd.xlane.f32.xlu0 %v1057
    %v1059 = vpop.xlane.xlu0 %1058
    %v1060 = vsel %vm82, %v1040, 0.0
    %1061 = vadd.xlane.f32.xlu0 %v1060
    %v1062 = vpop.xlane.xlu0 %1061
    %v1063 = vsel %vm82, %v1041, 0.0
    %1064 = vadd.xlane.f32.xlu0 %v1063
    %v1065 = vpop.xlane.xlu0 %1064
    %v1066 = vsel %vm82, %v1042, 0.0
    %1067 = vadd.xlane.f32.xlu0 %v1066
    %v1068 = vpop.xlane.xlu0 %1067
    %v1069 = vsel %vm82, %v1043, 0.0
    %1070 = vadd.xlane.f32.xlu0 %v1069
    %v1071 = vpop.xlane.xlu0 %1070
    %v1072 = vsel %vm82, %v1044, 0.0
    %1073 = vadd.xlane.f32.xlu0 %v1072
    %v1074 = vpop.xlane.xlu0 %1073
    %v1075 = vsel %vm82, %v1045, 0.0
    %1076 = vadd.xlane.f32.xlu0 %v1075
    %v1077 = vpop.xlane.xlu0 %1076
    %v1078 = vsel %vm82, %v1046, 0.0
    %1079 = vadd.xlane.f32.xlu0 %v1078
    %v1080 = vpop.xlane.xlu0 %1079
    %v1081 = vsel %vm82, %v1047, 0.0
    %1082 = vadd.xlane.f32.xlu0 %v1081
    %v1083 = vpop.xlane.xlu0 %1082
    %v1084 = vsel %vm82, %v1048, 0.0
    %1085 = vadd.xlane.f32.xlu0 %v1084
    %v1086 = vpop.xlane.xlu0 %1085
    %v1087 = vsel %vm82, %v1049, 0.0
    %1088 = vadd.xlane.f32.xlu0 %v1087
    %v1089 = vpop.xlane.xlu0 %1088
    %v1090 = vsel %vm82, %v1050, 0.0
    %1091 = vadd.xlane.f32.xlu0 %v1090
    %v1092 = vpop.xlane.xlu0 %1091
    %v1093 = vsel %vm82, %v1051, 0.0
    %1094 = vadd.xlane.f32.xlu0 %v1093
    %v1095 = vpop.xlane.xlu0 %1094
    %v1096 = vsel %vm82, %v1052, 0.0
    %1097 = vadd.xlane.f32.xlu0 %v1096
    %v1098 = vpop.xlane.xlu0 %1097
    %v1099 = vsel %vm82, %v1053, 0.0
    %1100 = vadd.xlane.f32.xlu0 %v1099
    %v1101 = vpop.xlane.xlu0 %1100
    %v1102 = vmul.f32 %v1056, 2.0
    %v1103 = vmul.f32 %v1059, 2.0
    %v1104 = vmul.f32 %v1062, 2.0
    %v1105 = vmul.f32 %v1065, 2.0
    %v1106 = vmul.f32 %v1068, 2.0
    %v1107 = vmul.f32 %v1071, 2.0
    %v1108 = vmul.f32 %v1074, 2.0
    %v1109 = vmul.f32 %v1077, 2.0
    %v1110 = vmul.f32 %v1080, 2.0
    %v1111 = vmul.f32 %v1083, 2.0
    %v1112 = vmul.f32 %v1086, 2.0
    %v1113 = vmul.f32 %v1089, 2.0
    %v1114 = vmul.f32 %v1092, 2.0
    %v1115 = vmul.f32 %v1095, 2.0
    %v1116 = vmul.f32 %v1098, 2.0
    %v1117 = vmul.f32 %v1101, 2.0
    %v1118 = vmul.f32 %v163, %v163
    %v1119 = vmul.f32 %v164, %v164
    %v1120 = vmul.f32 %v165, %v165
    %v1121 = vmul.f32 %v166, %v166
    %v1122 = vmul.f32 %v167, %v167
    %v1123 = vmul.f32 %v168, %v168
    %v1124 = vmul.f32 %v169, %v169
    %v1125 = vmul.f32 %v170, %v170
    %v1126 = vmul.f32 %v171, %v171
    %v1127 = vmul.f32 %v172, %v172
    %v1128 = vmul.f32 %v173, %v173
    %v1129 = vmul.f32 %v174, %v174
    %v1130 = vmul.f32 %v175, %v175
    %v1131 = vmul.f32 %v176, %v176
    %v1132 = vmul.f32 %v177, %v177
    %v1133 = vmul.f32 %v178, %v178
    %v1134 = vsel %vm82, %v1118, 0.0
    %1135 = vadd.xlane.f32.xlu0 %v1134
    %v1136 = vpop.xlane.xlu0 %1135
    %v1137 = vsel %vm82, %v1119, 0.0
    %1138 = vadd.xlane.f32.xlu0 %v1137
    %v1139 = vpop.xlane.xlu0 %1138
    %v1140 = vsel %vm82, %v1120, 0.0
    %1141 = vadd.xlane.f32.xlu0 %v1140
    %v1142 = vpop.xlane.xlu0 %1141
    %v1143 = vsel %vm82, %v1121, 0.0
    %1144 = vadd.xlane.f32.xlu0 %v1143
    %v1145 = vpop.xlane.xlu0 %1144
    %v1146 = vsel %vm82, %v1122, 0.0
    %1147 = vadd.xlane.f32.xlu0 %v1146
    %v1148 = vpop.xlane.xlu0 %1147
    %v1149 = vsel %vm82, %v1123, 0.0
    %1150 = vadd.xlane.f32.xlu0 %v1149
    %v1151 = vpop.xlane.xlu0 %1150
    %v1152 = vsel %vm82, %v1124, 0.0
    %1153 = vadd.xlane.f32.xlu0 %v1152
    %v1154 = vpop.xlane.xlu0 %1153
    %v1155 = vsel %vm82, %v1125, 0.0
    %1156 = vadd.xlane.f32.xlu0 %v1155
    %v1157 = vpop.xlane.xlu0 %1156
    %v1158 = vsel %vm82, %v1126, 0.0
    %1159 = vadd.xlane.f32.xlu0 %v1158
    %v1160 = vpop.xlane.xlu0 %1159
    %v1161 = vsel %vm82, %v1127, 0.0
    %1162 = vadd.xlane.f32.xlu0 %v1161
    %v1163 = vpop.xlane.xlu0 %1162
    %v1164 = vsel %vm82, %v1128, 0.0
    %1165 = vadd.xlane.f32.xlu0 %v1164
    %v1166 = vpop.xlane.xlu0 %1165
    %v1167 = vsel %vm82, %v1129, 0.0
    %1168 = vadd.xlane.f32.xlu0 %v1167
    %v1169 = vpop.xlane.xlu0 %1168
    %v1170 = vsel %vm82, %v1130, 0.0
    %1171 = vadd.xlane.f32.xlu0 %v1170
    %v1172 = vpop.xlane.xlu0 %1171
    %v1173 = vsel %vm82, %v1131, 0.0
    %1174 = vadd.xlane.f32.xlu0 %v1173
    %v1175 = vpop.xlane.xlu0 %1174
    %v1176 = vsel %vm82, %v1132, 0.0
    %1177 = vadd.xlane.f32.xlu0 %v1176
    %v1178 = vpop.xlane.xlu0 %1177
    %v1179 = vsel %vm82, %v1133, 0.0
    %1180 = vadd.xlane.f32.xlu0 %v1179
    %v1181 = vpop.xlane.xlu0 %1180
    %v1182 = vmul.f32 %v1136, 2.0
    %v1183 = vmul.f32 %v1139, 2.0
    %v1184 = vmul.f32 %v1142, 2.0
    %v1185 = vmul.f32 %v1145, 2.0
    %v1186 = vmul.f32 %v1148, 2.0
    %v1187 = vmul.f32 %v1151, 2.0
    %v1188 = vmul.f32 %v1154, 2.0
    %v1189 = vmul.f32 %v1157, 2.0
    %v1190 = vmul.f32 %v1160, 2.0
    %v1191 = vmul.f32 %v1163, 2.0
    %v1192 = vmul.f32 %v1166, 2.0
    %v1193 = vmul.f32 %v1169, 2.0
    %v1194 = vmul.f32 %v1172, 2.0
    %v1195 = vmul.f32 %v1175, 2.0
    %v1196 = vmul.f32 %v1178, 2.0
    %v1197 = vmul.f32 %v1181, 2.0
    %v1198 = vmul.f32 %v1182, 1.442695
    %v1199 = vpow.pop %v1198
    %v1200 = vmul.f32 %v1183, 1.442695
    %v1201 = vpow.pop %v1200
    %v1202 = vmul.f32 %v1184, 1.442695
    %v1203 = vpow.pop %v1202
    %v1204 = vmul.f32 %v1185, 1.442695
    %v1205 = vpow.pop %v1204
    %v1206 = vmul.f32 %v1186, 1.442695
    %v1207 = vpow.pop %v1206
    %v1208 = vmul.f32 %v1187, 1.442695
    %v1209 = vpow.pop %v1208
    %v1210 = vmul.f32 %v1188, 1.442695
    %v1211 = vpow.pop %v1210
    %v1212 = vmul.f32 %v1189, 1.442695
    %v1213 = vpow.pop %v1212
    %v1214 = vmul.f32 %v1190, 1.442695
    %v1215 = vpow.pop %v1214
    %v1216 = vmul.f32 %v1191, 1.442695
    %v1217 = vpow.pop %v1216
    %v1218 = vmul.f32 %v1192, 1.442695
    %v1219 = vpow.pop %v1218
    %v1220 = vmul.f32 %v1193, 1.442695
    %v1221 = vpow.pop %v1220
    %v1222 = vmul.f32 %v1194, 1.442695
    %v1223 = vpow.pop %v1222
    %v1224 = vmul.f32 %v1195, 1.442695
    %v1225 = vpow.pop %v1224
    %v1226 = vmul.f32 %v1196, 1.442695
    %v1227 = vpow.pop %v1226
    %v1228 = vmul.f32 %v1197, 1.442695
    %v1229 = vpow.pop %v1228
    %v1230 = vld [vmem:[#allocation2] sm:$0xff]
    %v1231 = vld [vmem:[#allocation2 + $0x8] sm:$0xff]
    %v1232 = vld [vmem:[#allocation2 + $0x10] sm:$0xff]
    %v1233 = vld [vmem:[#allocation2 + $0x18] sm:$0xff]
    %v1234 = vld [vmem:[#allocation2 + $0x20] sm:$0xff]
    %v1235 = vld [vmem:[#allocation2 + $0x28] sm:$0xff]
    %v1236 = vld [vmem:[#allocation2 + $0x30] sm:$0xff]
    %v1237 = vld [vmem:[#allocation2 + $0x38] sm:$0xff]
    %v1238 = vld [vmem:[#allocation2 + $0x40] sm:$0xff]
    %v1239 = vld [vmem:[#allocation2 + $0x48] sm:$0xff]
    %v1240 = vld [vmem:[#allocation2 + $0x50] sm:$0xff]
    %v1241 = vld [vmem:[#allocation2 + $0x58] sm:$0xff]
    %v1242 = vld [vmem:[#allocation2 + $0x60] sm:$0xff]
    %v1243 = vld [vmem:[#allocation2 + $0x68] sm:$0xff]
    %v1244 = vld [vmem:[#allocation2 + $0x70] sm:$0xff]
    %v1245 = vld [vmem:[#allocation2 + $0x78] sm:$0xff]
    %v1246 = vsub.f32 %v1230, %v1199
    %v1247 = vsub.f32 %v1231, %v1201
    %v1248 = vsub.f32 %v1232, %v1203
    %v1249 = vsub.f32 %v1233, %v1205
    %v1250 = vsub.f32 %v1234, %v1207
    %v1251 = vsub.f32 %v1235, %v1209
    %v1252 = vsub.f32 %v1236, %v1211
    %v1253 = vsub.f32 %v1237, %v1213
    %v1254 = vsub.f32 %v1238, %v1215
    %v1255 = vsub.f32 %v1239, %v1217
    %v1256 = vsub.f32 %v1240, %v1219
    %v1257 = vsub.f32 %v1241, %v1221
    %v1258 = vsub.f32 %v1242, %v1223
    %v1259 = vsub.f32 %v1243, %v1225
    %v1260 = vsub.f32 %v1244, %v1227
    %v1261 = vsub.f32 %v1245, %v1229
    %v1262 = vlog2.pop %v1246
    %v1263 = vmul.f32 %v1262, 0.6931472
    %v1264 = vlog2.pop %v1247
    %v1265 = vmul.f32 %v1264, 0.6931472
    %v1266 = vlog2.pop %v1248
    %v1267 = vmul.f32 %v1266, 0.6931472
    %v1268 = vlog2.pop %v1249
    %v1269 = vmul.f32 %v1268, 0.6931472
    %v1270 = vlog2.pop %v1250
    %v1271 = vmul.f32 %v1270, 0.6931472
    %v1272 = vlog2.pop %v1251
    %v1273 = vmul.f32 %v1272, 0.6931472
    %v1274 = vlog2.pop %v1252
    %v1275 = vmul.f32 %v1274, 0.6931472
    %v1276 = vlog2.pop %v1253
    %v1277 = vmul.f32 %v1276, 0.6931472
    %v1278 = vlog2.pop %v1254
    %v1279 = vmul.f32 %v1278, 0.6931472
    %v1280 = vlog2.pop %v1255
    %v1281 = vmul.f32 %v1280, 0.6931472
    %v1282 = vlog2.pop %v1256
    %v1283 = vmul.f32 %v1282, 0.6931472
    %v1284 = vlog2.pop %v1257
    %v1285 = vmul.f32 %v1284, 0.6931472
    %v1286 = vlog2.pop %v1258
    %v1287 = vmul.f32 %v1286, 0.6931472
    %v1288 = vlog2.pop %v1259
    %v1289 = vmul.f32 %v1288, 0.6931472
    %v1290 = vlog2.pop %v1260
    %v1291 = vmul.f32 %v1290, 0.6931472
    %v1292 = vlog2.pop %v1261
    %v1293 = vmul.f32 %v1292, 0.6931472
    %v1294 = vsub.f32 %v1102, %v1263
    %v1295 = vsub.f32 %v1103, %v1265
    %v1296 = vsub.f32 %v1104, %v1267
    %v1297 = vsub.f32 %v1105, %v1269
    %v1298 = vsub.f32 %v1106, %v1271
    %v1299 = vsub.f32 %v1107, %v1273
    %v1300 = vsub.f32 %v1108, %v1275
    %v1301 = vsub.f32 %v1109, %v1277
    %v1302 = vsub.f32 %v1110, %v1279
    %v1303 = vsub.f32 %v1111, %v1281
    %v1304 = vsub.f32 %v1112, %v1283
    %v1305 = vsub.f32 %v1113, %v1285
    %v1306 = vsub.f32 %v1114, %v1287
    %v1307 = vsub.f32 %v1115, %v1289
    %v1308 = vsub.f32 %v1116, %v1291
    %v1309 = vsub.f32 %v1117, %v1293
    %1310 = vst.msk [vmem:[%s4] sm:$0xff] %vm890, %v1294
    %1311 = vst.msk [vmem:[%s4 + $0x8] sm:$0xff] %vm890, %v1295
    %1312 = vst.msk [vmem:[%s4 + $0x10] sm:$0xff] %vm890, %v1296
    %1313 = vst.msk [vmem:[%s4 + $0x18] sm:$0xff] %vm890, %v1297
    %1314 = vst.msk [vmem:[%s4 + $0x20] sm:$0xff] %vm890, %v1298
    %1315 = vst.msk [vmem:[%s4 + $0x28] sm:$0xff] %vm890, %v1299
    %1316 = vst.msk [vmem:[%s4 + $0x30] sm:$0xff] %vm890, %v1300
    %1317 = vst.msk [vmem:[%s4 + $0x38] sm:$0xff] %vm890, %v1301
    %1318 = vst.msk [vmem:[%s4 + $0x40] sm:$0xff] %vm890, %v1302
    %1319 = vst.msk [vmem:[%s4 + $0x48] sm:$0xff] %vm890, %v1303
    %1320 = vst.msk [vmem:[%s4 + $0x50] sm:$0xff] %vm890, %v1304
    %1321 = vst.msk [vmem:[%s4 + $0x58] sm:$0xff] %vm890, %v1305
    %1322 = vst.msk [vmem:[%s4 + $0x60] sm:$0xff] %vm890, %v1306
    %1323 = vst.msk [vmem:[%s4 + $0x68] sm:$0xff] %vm890, %v1307
    %1324 = vst.msk [vmem:[%s4 + $0x70] sm:$0xff] %vm890, %v1308
    %1325 = vst.msk [vmem:[%s4 + $0x78] sm:$0xff] %vm890, %v1309
  $region25: #{tpu_custom_call.1} parent=0 // pred_fallthru
    _
  // Predicated region
  $region26: #{tpu_custom_call.1} parent=0 // pred_check
    _
  $region27: #{tpu_custom_call.1} parent=0 // pred_check_branch
    %1327 = sbr.rel (0) target = $region29
  $region28: #{tpu_custom_call.1} parent=0 // pred_region
    _
  $region29: #{tpu_custom_call.1} parent=0 // pred_fallthru
    _
  // Predicated region
  $region30: #{tpu_custom_call.1} parent=0 // pred_check
    _
  $region31: #{tpu_custom_call.1} parent=0 // pred_check_branch
    %1329 = sbr.rel (0) target = $region33
  $region32: #{tpu_custom_call.1} parent=0 // pred_region
    _
  $region33: #{tpu_custom_call.1} parent=0 // pred_fallthru
    _

</llo_original>
